<compile_context>
chip_gen: v7x
topology: tpu7x:2x2x1
jax: 0.10.0
libtpu: 0.0.40
codegen_flags: <defaults>
</compile_context>

<pallas_src>
import functools

import jax
import jax.numpy as jnp
from jax.experimental import pallas as pl
from jax.experimental.pallas import tpu as pltpu


def _policy_kernel(x_ref, w12_ref, b12_ref, w3_ref, b3_ref, o_ref, *, slope):
    # in-VMEM cast of the input tile to the weight compute dtype (no-op for f32)
    x = x_ref[...].astype(w12_ref.dtype)

    # folded mlp (L2 ∘ L1): single linear, f32 accumulation on the MXU
    h = jnp.dot(x, w12_ref[...], preferred_element_type=jnp.float32) + b12_ref[...]

    # leaky_relu (0 < slope < 1  =>  max(h, slope*h) == leaky_relu(h, slope))
    h = jnp.maximum(h, slope * h)

    # fc (cast f32 activations to weight compute dtype; no-op for f32)
    out = jnp.dot(h.astype(w3_ref.dtype), w3_ref[...],
                  preferred_element_type=jnp.float32) + b3_ref[...]
    out = jnp.maximum(out, slope * out)

    o_ref[...] = out.astype(o_ref.dtype)


def _round_up(x, m):
    return (x + m - 1) // m * m


def prepare_params(params, compute_dtype=None):
    """Fold L1/L2 into a single linear and apply weight casts ONCE.

    Call this once (outside the per-step path) and reuse the result; folding,
    bias fold and .astype() are ordinary XLA ops and would otherwise be
    re-emitted on every forward call.
    """
    f32 = jnp.float32
    w1, b1 = params["w1"].astype(f32), params["b1"].astype(f32)
    w2, b2 = params["w2"].astype(f32), params["b2"].astype(f32)

    w12 = jnp.dot(w1, w2)                       # [dim_input, dim_out]
    b12 = jnp.dot(b1, w2) + b2                  # [1, dim_out]
    w3 = params["w3"].astype(f32)               # [dim_out, n_act]
    b3 = params["b3"].astype(f32)               # [1, n_act]

    if compute_dtype is not None:
        w12 = w12.astype(compute_dtype)
        w3 = w3.astype(compute_dtype)

    return {"w12": w12, "b12": b12, "w3": w3, "b3": b3}


def mapzero_policy_net(x, prepared, slope_leaky_relu, *, tile_b=4096,
                       out_dtype=None):
    """x: [B, dim_input]; prepared: output of prepare_params().

    Biases / activations are f32 inside the kernel regardless of the weight
    compute dtype; accumulation is f32 on the MXU.
    """
    slope = float(slope_leaky_relu)
    assert 0.0 < slope < 1.0, "leaky_relu slope must be in (0, 1)"

    w12, b12 = prepared["w12"], prepared["b12"]
    w3, b3 = prepared["w3"], prepared["b3"]

    B, dim_input = x.shape
    n_act = w3.shape[1]
    out_dtype = x.dtype if out_dtype is None else out_dtype

    # --- batch tiling: no padding, ragged last block handled by Pallas ------
    tile_b = max(8, min(int(tile_b), _round_up(B, 8)))
    num_tiles = pl.cdiv(B, tile_b)
    # give v7x's second TensorCore work when the batch fits in one tile
    if num_tiles == 1 and B >= 64:
        tile_b = _round_up(pl.cdiv(B, 2), 8)
        num_tiles = pl.cdiv(B, tile_b)

    kernel = functools.partial(_policy_kernel, slope=slope)

    in_bytes = jnp.dtype(x.dtype).itemsize
    w_bytes = jnp.dtype(w12.dtype).itemsize
    cost = pl.CostEstimate(
        flops=2 * B * (dim_input * w12.shape[1] + w3.shape[0] * n_act),
        transcendentals=0,
        bytes_accessed=(B * dim_input * in_bytes
                        + B * n_act * jnp.dtype(out_dtype).itemsize
                        + (w12.size + w3.size) * w_bytes
                        + (b12.size + b3.size) * 4),
    )

    return pl.pallas_call(
        kernel,
        out_shape=jax.ShapeDtypeStruct((B, n_act), out_dtype),
        grid=(num_tiles,),
        in_specs=[
            pl.BlockSpec((tile_b, dim_input), lambda i: (i, 0)),   # x tile
            pl.BlockSpec(w12.shape, lambda i: (0, 0)),             # resident
            pl.BlockSpec(b12.shape, lambda i: (0, 0)),             # resident
            pl.BlockSpec(w3.shape, lambda i: (0, 0)),              # resident
            pl.BlockSpec(b3.shape, lambda i: (0, 0)),              # resident
        ],
        out_specs=pl.BlockSpec((tile_b, n_act), lambda i: (i, 0)),
        compiler_params=pltpu.CompilerParams(
            dimension_semantics=("parallel",),   # megacore batch split on v7x
            vmem_limit_bytes=32 << 20,           # safe on v5e/v6e/v7x
        ),
        cost_estimate=cost,
    )(x, w12, b12, w3, b3)


def init_params(key, dim_input, dim_out, size_space_action, dtype=jnp.float32):
    """Deterministic synthetic parameters (PyTorch-Linear-like uniform init)."""
    ks = jax.random.split(key, 6)

    def uni(k, shape, fan_in):
        bound = 1.0 / jnp.sqrt(fan_in)
        return jax.random.uniform(k, shape, dtype=dtype, minval=-bound, maxval=bound)

    return {
        # weights stored [in, out] (transposed vs. PyTorch's [out, in])
        "w1": uni(ks[0], (dim_input, dim_out), dim_input),
        "b1": uni(ks[1], (1, dim_out), dim_input),
        "w2": uni(ks[2], (dim_out, dim_out), dim_out),
        "b2": uni(ks[3], (1, dim_out), dim_out),
        "w3": uni(ks[4], (dim_out, size_space_action), dim_out),
        "b3": uni(ks[5], (1, size_space_action), dim_out),
    }


def _reference(x, params, slope):
    """Pure-JAX reference with the ORIGINAL (un-folded) weights."""
    h = x @ params["w1"] + params["b1"]
    h = h @ params["w2"] + params["b2"]
    h = jnp.where(h >= 0, h, slope * h)
    o = h @ params["w3"] + params["b3"]
    return jnp.where(o >= 0, o, slope * o)


if __name__ == "__main__":
    dim_input = 32
    dim_out = 64
    size_space_action = 16
    slope = 0.01
    dtype = jnp.float32

    key = jax.random.PRNGKey(0)
    k_x, k_p, k_x2 = jax.random.split(key, 3)
    params = init_params(k_p, dim_input, dim_out, size_space_action, dtype)

    # fold weights once (hoisted out of the per-call path)
    prepared_f32 = prepare_params(params)
    prepared_bf16 = prepare_params(params, compute_dtype=jnp.bfloat16)

    # --- small batch (single tile, block larger than batch) -------------
    batch = 8
    x = jax.random.normal(k_x, (batch, dim_input), dtype=dtype)
    out = jax.block_until_ready(mapzero_policy_net(x, prepared_f32, slope))
    ref = _reference(x, params, slope)
    assert out.shape == (batch, size_space_action)
    assert jnp.allclose(out, ref, atol=1e-5, rtol=1e-5)

    # --- batch not divisible by the tile (exercises ragged last block) --
    batch2 = 520
    x2 = jax.random.normal(k_x2, (batch2, dim_input), dtype=dtype)
    out2 = jax.block_until_ready(
        mapzero_policy_net(x2, prepared_f32, slope, tile_b=256))
    ref2 = _reference(x2, params, slope)
    assert out2.shape == (batch2, size_space_action)
    assert jnp.allclose(out2, ref2, atol=1e-5, rtol=1e-5)

    # --- default (large) tile_b with the v7x two-tile split path --------
    out3 = jax.block_until_ready(mapzero_policy_net(x2, prepared_f32, slope))
    assert out3.shape == (batch2, size_space_action)
    assert jnp.allclose(out3, ref2, atol=1e-5, rtol=1e-5)

    # --- bf16 weight-compute path (f32 accumulate, f32 activations) -----
    out_bf16 = jax.block_until_ready(
        mapzero_policy_net(x2, prepared_bf16, slope, tile_b=256))
    assert out_bf16.shape == (batch2, size_space_action)
    assert bool(jnp.all(jnp.isfinite(out_bf16)))
    assert jnp.allclose(out_bf16, ref2, atol=5e-2, rtol=5e-2)

    print("KERNEL_OK")
</pallas_src>

<mosaic_0001>
module attributes {stable_mosaic.version = 11 : i64} {
  func.func @_policy_kernel(%arg0: i32, %arg1: memref<8x32xf32, #tpu.memory_space<vmem>>, %arg2: memref<32x64xf32, #tpu.memory_space<vmem>>, %arg3: memref<1x64xf32, #tpu.memory_space<vmem>>, %arg4: memref<64x16xf32, #tpu.memory_space<vmem>>, %arg5: memref<1x16xf32, #tpu.memory_space<vmem>>, %arg6: memref<8x16xf32, #tpu.memory_space<vmem>>) attributes {dimension_semantics = [#tpu.dimension_semantics<parallel>], iteration_bounds = array<i64: 1>, scalar_prefetch = 0 : i64, scratch_operands = 0 : i64, tpu.core_type = #tpu.core_type<tc>, window_params = [{transform_indices = @transform_0, window_bounds = array<i64: 8, 32>}, {pipeline_mode = #tpu.pipeline_mode<synchronous>, transform_indices = @transform_1, window_bounds = array<i64: 32, 64>}, {pipeline_mode = #tpu.pipeline_mode<synchronous>, transform_indices = @transform_2, window_bounds = array<i64: 1, 64>}, {pipeline_mode = #tpu.pipeline_mode<synchronous>, transform_indices = @transform_3, window_bounds = array<i64: 64, 16>}, {pipeline_mode = #tpu.pipeline_mode<synchronous>, transform_indices = @transform_4, window_bounds = array<i64: 1, 16>}, {transform_indices = @transform_5, window_bounds = array<i64: 8, 16>}]} {
    %c0 = arith.constant 0 : index
    %c0_0 = arith.constant 0 : index
    %0 = vector.load %arg1[%c0, %c0_0] : memref<8x32xf32, #tpu.memory_space<vmem>>, vector<8x32xf32>
    %c0_1 = arith.constant 0 : index
    %c0_2 = arith.constant 0 : index
    %1 = vector.load %arg2[%c0_1, %c0_2] : memref<32x64xf32, #tpu.memory_space<vmem>>, vector<32x64xf32>
    %cst = arith.constant dense<0.000000e+00> : vector<8x64xf32>
    %2 = tpu.matmul %0, %1, %cst {dimension_numbers = #tpu.dot_dimension_numbers<[1], [0], [0], [1], [0, 0, 1, 1], [], []>} : vector<8x32xf32>, vector<32x64xf32>, vector<8x64xf32> -> vector<8x64xf32>
    %c0_3 = arith.constant 0 : index
    %c0_4 = arith.constant 0 : index
    %3 = vector.load %arg3[%c0_3, %c0_4] : memref<1x64xf32, #tpu.memory_space<vmem>>, vector<1x64xf32>
    %4 = vector.broadcast %3 : vector<1x64xf32> to vector<8x64xf32>
    %5 = arith.addf %2, %4 : vector<8x64xf32>
    %cst_5 = arith.constant 0.00999999977 : f32
    %6 = vector.broadcast %cst_5 : f32 to vector<8x64xf32>
    %7 = arith.mulf %6, %5 : vector<8x64xf32>
    %8 = arith.maximumf %5, %7 : vector<8x64xf32>
    %c0_6 = arith.constant 0 : index
    %c0_7 = arith.constant 0 : index
    %9 = vector.load %arg4[%c0_6, %c0_7] : memref<64x16xf32, #tpu.memory_space<vmem>>, vector<64x16xf32>
    %cst_8 = arith.constant dense<0.000000e+00> : vector<8x16xf32>
    %10 = tpu.matmul %8, %9, %cst_8 {dimension_numbers = #tpu.dot_dimension_numbers<[1], [0], [0], [1], [0, 0, 1, 1], [], []>} : vector<8x64xf32>, vector<64x16xf32>, vector<8x16xf32> -> vector<8x16xf32>
    %c0_9 = arith.constant 0 : index
    %c0_10 = arith.constant 0 : index
    %11 = vector.load %arg5[%c0_9, %c0_10] : memref<1x16xf32, #tpu.memory_space<vmem>>, vector<1x16xf32>
    %12 = vector.broadcast %11 : vector<1x16xf32> to vector<8x16xf32>
    %13 = arith.addf %10, %12 : vector<8x16xf32>
    %cst_11 = arith.constant 0.00999999977 : f32
    %14 = vector.broadcast %cst_11 : f32 to vector<8x16xf32>
    %15 = arith.mulf %14, %13 : vector<8x16xf32>
    %16 = arith.maximumf %13, %15 : vector<8x16xf32>
    %c0_12 = arith.constant 0 : index
    %c0_13 = arith.constant 0 : index
    %17 = vector.load %arg6[%c0_12, %c0_13] : memref<8x16xf32, #tpu.memory_space<vmem>>, vector<8x16xf32>
    tpu.vector_store %arg6[%c0_12, %c0_13], %16 {strides = array<i32>} : memref<8x16xf32, #tpu.memory_space<vmem>>, vector<8x16xf32>,
    return
  }
  func.func @transform_0(%arg0: i32) -> (i32, i32) {
    %c0_i32 = arith.constant 0 : i32
    %c0_i32_0 = arith.constant 0 : i32
    return %arg0, %c0_i32 : i32, i32
  }
  func.func @transform_1(%arg0: i32) -> (i32, i32) {
    %c0_i32 = arith.constant 0 : i32
    %c0_i32_0 = arith.constant 0 : i32
    %c0_i32_1 = arith.constant 0 : i32
    return %c0_i32, %c0_i32_0 : i32, i32
  }
  func.func @transform_2(%arg0: i32) -> (i32, i32) {
    %c0_i32 = arith.constant 0 : i32
    %c0_i32_0 = arith.constant 0 : i32
    %c0_i32_1 = arith.constant 0 : i32
    return %c0_i32, %c0_i32_0 : i32, i32
  }
  func.func @transform_3(%arg0: i32) -> (i32, i32) {
    %c0_i32 = arith.constant 0 : i32
    %c0_i32_0 = arith.constant 0 : i32
    %c0_i32_1 = arith.constant 0 : i32
    return %c0_i32, %c0_i32_0 : i32, i32
  }
  func.func @transform_4(%arg0: i32) -> (i32, i32) {
    %c0_i32 = arith.constant 0 : i32
    %c0_i32_0 = arith.constant 0 : i32
    %c0_i32_1 = arith.constant 0 : i32
    return %c0_i32, %c0_i32_0 : i32, i32
  }
  func.func @transform_5(%arg0: i32) -> (i32, i32) {
    %c0_i32 = arith.constant 0 : i32
    %c0_i32_0 = arith.constant 0 : i32
    return %arg0, %c0_i32 : i32, i32
  }
}

</mosaic_0001>

<llo_original>
// kernel: tpu_custom_call.1
$region0: #{tpu_custom_call.1}
  #allocation0 [shape = 'u32[]', space=smem, size = 0x4, offset = 0x4, fixed_abs, tag = 'smem constant byte address 0x4 - core index']
  #allocation1 [shape = 'u32[144,128]{1,0:T(1,128)}', space=vmem, size = 0x12000, scoped, tag = 'internal scratch']
  %s0 = inlined_call_operand.vmem [shape: f32[8,32], index: 0, kind: input, shape index: {}]
  %s1 = inlined_call_operand.vmem [shape: f32[32,64], index: 1, kind: input, shape index: {}]
  %s2 = inlined_call_operand.vmem [shape: f32[1,64], index: 2, kind: input, shape index: {}]
  %s3 = inlined_call_operand.vmem [shape: f32[64,16], index: 3, kind: input, shape index: {}]
  %s4 = inlined_call_operand.vmem [shape: f32[1,16], index: 4, kind: input, shape index: {}]
  %s5 = inlined_call_operand.hbm [shape: f32[8,16], index: 5, kind: output, shape index: {}]
  %s6 = sld [smem:[#allocation0]]
  $region30: #{tpu_custom_call.1} parent=0
    _
  %s8 = ssub.s32 1, %s6
  %s9 = scalar_select 0, %s8, %s6
  $region1: #{tpu_custom_call.1} parent=0
    #allocation2 [shape = 'u8[4096]{0}', space=vmem, size = 0x1000, scoped, tag = 'output window, operand 0, single buffered']
    #allocation3 [shape = 's32[1]{0}', space=sflag, size = 0x4, scoped, tag = 'scoped memory for tpu_custom_call.1']
    %10 = vsyncpa [#allocation3], 0
    // Predicated region
    $region2: #{tpu_custom_call.1} parent=1 // pred_check
      _
    $region3: #{tpu_custom_call.1} parent=1 // pred_check_branch
      %12 = sbr.rel (0) target = $region5
    $region4: #{tpu_custom_call.1} parent=1 // pred_region
      _
    $region5: #{tpu_custom_call.1} parent=1 // pred_fallthru
      _
    // Predicated region
    $region6: #{tpu_custom_call.1} parent=1 // pred_check
      _
    $region7: #{tpu_custom_call.1} parent=1 // pred_check_branch
      %14 = sbr.rel (0) target = $region9
    $region8: #{tpu_custom_call.1} parent=1 // pred_region
      _
    $region9: #{tpu_custom_call.1} parent=1 // pred_fallthru
      _
    // Predicated region
    $region10: #{tpu_custom_call.1} parent=1 // pred_check
      _
    $region11: #{tpu_custom_call.1} parent=1 // pred_check_branch
      %16 = sbr.rel (0) target = $region13
    $region12: #{tpu_custom_call.1} parent=1 // pred_region
      _
    $region13: #{tpu_custom_call.1} parent=1 // pred_fallthru
      _
    // Predicated region
    $region14: #{tpu_custom_call.1} parent=1 // pred_check
      _
    $region15: #{tpu_custom_call.1} parent=1 // pred_check_branch
      %18 = sbr.rel (0) target = $region17
    $region16: #{tpu_custom_call.1} parent=1 // pred_region
      _
    $region17: #{tpu_custom_call.1} parent=1 // pred_fallthru
      _
    // Predicated region
    $region18: #{tpu_custom_call.1} parent=1 // pred_check
      _
    $region19: #{tpu_custom_call.1} parent=1 // pred_check_branch
      %20 = sbr.rel (0) target = $region21
    $region20: #{tpu_custom_call.1} parent=1 // pred_region
      _
    $region21: #{tpu_custom_call.1} parent=1 // pred_fallthru
      _
    %v21 = vld [vmem:[%s0] sm:$0xff]
    %v22 = vld [vmem:[%s1] sm:$0xff]
    %v23 = vld [vmem:[%s1 + $0x8] sm:$0xff]
    %v24 = vld [vmem:[%s1 + $0x10] sm:$0xff]
    %v25 = vld [vmem:[%s1 + $0x18] sm:$0xff]
    %v26 = vld [vmem:[%s2] sm:$0x1]
    %v28 = vlaneseq
    %v29 = vshrl.u32 %v28, 7
    %v30 = vsub.s32 0, %v29
    %v31 = vrot.slane %v26, %v30
    %vm33 = vcmask 261120
    %v35 = vsel %vm33, %v21, 0
    %37 = vmatprep.subr.mxu0 0.0
    %38 = vmatpush1.msra.mxu0 %v22
    %39 = vmatprep.subr.mxu0 0.0
    %40 = vmatpush1.msra.mxu0 %v23
    %41 = vmatprep.subr.mxu0 0.0
    %42 = vmatpush1.msra.mxu0 %v24
    %43 = vmatprep.subr.mxu0 0.0
    %44 = vmatpush1.msra.mxu0 %v25
    %45 = vmatprep.subr.mxu0 0.0
    %46 = vmatpush1.msra.mxu0 0.0
    %47 = vmatprep.subr.mxu0 0.0
    %48 = vmatpush1.msra.mxu0 0.0
    %49 = vmatprep.subr.mxu0 0.0
    %50 = vmatpush1.msra.mxu0 0.0
    %51 = vmatprep.subr.mxu0 0.0
    %52 = vmatpush1.msra.mxu0 0.0
    %53 = vmatprep.subr.mxu0 0.0
    %54 = vmatpush1.msra.mxu0 0.0
    %55 = vmatprep.subr.mxu0 0.0
    %56 = vmatpush1.msra.mxu0 0.0
    %57 = vmatprep.subr.mxu0 0.0
    %58 = vmatpush1.msra.mxu0 0.0
    %59 = vmatprep.subr.mxu0 0.0
    %60 = vmatpush1.msra.mxu0 0.0
    %61 = vmatprep.subr.mxu0 0.0
    %62 = vmatpush1.msra.mxu0 0.0
    %63 = vmatprep.subr.mxu0 0.0
    %64 = vmatpush1.msra.mxu0 0.0
    %65 = vmatprep.subr.mxu0 0.0
    %66 = vmatpush1.msra.mxu0 0.0
    %67 = vmatprep.subr.mxu0 0.0
    %68 = vmatpush1.msra.mxu0 0.0
    %69 = vmatprep.subr.mxu0 0.0
    %70 = vmatpush1.msra.mxu0 0.0
    %71 = vmatprep.subr.mxu0 0.0
    %72 = vmatpush1.msra.mxu0 0.0
    %73 = vmatprep.subr.mxu0 0.0
    %74 = vmatpush1.msra.mxu0 0.0
    %75 = vmatprep.subr.mxu0 0.0
    %76 = vmatpush1.msra.mxu0 0.0
    %77 = vmatprep.subr.mxu0 0.0
    %78 = vmatpush1.msra.mxu0 0.0
    %79 = vmatprep.subr.mxu0 0.0
    %80 = vmatpush1.msra.mxu0 0.0
    %81 = vmatprep.subr.mxu0 0.0
    %82 = vmatpush1.msra.mxu0 0.0
    %83 = vmatprep.subr.mxu0 0.0
    %84 = vmatpush1.msra.mxu0 0.0
    %85 = vmatprep.subr.mxu0 0.0
    %86 = vmatpush1.msra.mxu0 0.0
    %87 = vmatprep.subr.mxu0 0.0
    %88 = vmatpush1.msra.mxu0 0.0
    %89 = vmatprep.subr.mxu0 0.0
    %90 = vmatpush1.msra.mxu0 0.0
    %91 = vmatprep.subr.mxu0 0.0
    %92 = vmatpush1.msra.mxu0 0.0
    %93 = vmatprep.subr.mxu0 0.0
    %94 = vmatpush1.msra.mxu0 0.0
    %95 = vmatprep.subr.mxu0 0.0
    %96 = vmatpush1.msra.mxu0 0.0
    %97 = vmatprep.subr.mxu0 0.0
    %98 = vmatpush1.msra.mxu0 0.0
    %99 = vmatprep.subr.mxu0 0.0
    %100 = vmatpush1.msra.mxu0 0.0
    %101 = vmatprep.mubr.f32.mxu0 0.0
    %102 = vmatmul.mubr.f32.gmra.mrb[0].mxu0 %v35
    %v103 = vpop.f32.mrb[0].mxu0
    %v104 = vadd.f32 %v31, %v103
    %v105 = vpop.f32.mrb[0].mxu0
    %106 = vdwg.mxu0
    %v107 = vmul.f32 %v104, 0.01
    %v108 = vmax.f32 %v104, %v107
    %v109 = vld [vmem:[%s3] sm:$0xff]
    %v110 = vld [vmem:[%s3 + $0x8] sm:$0xff]
    %v111 = vld [vmem:[%s3 + $0x10] sm:$0xff]
    %v112 = vld [vmem:[%s3 + $0x18] sm:$0xff]
    %v113 = vld [vmem:[%s3 + $0x20] sm:$0xff]
    %v114 = vld [vmem:[%s3 + $0x28] sm:$0xff]
    %v115 = vld [vmem:[%s3 + $0x30] sm:$0xff]
    %v116 = vld [vmem:[%s3 + $0x38] sm:$0xff]
    %v117 = vld [vmem:[%s4] sm:$0x1]
    %v119 = vlaneseq
    %v120 = vshrl.u32 %v119, 7
    %v121 = vsub.s32 0, %v120
    %v122 = vrot.slane %v117, %v121
    %vm124 = vcmask 523264
    %v126 = vsel %vm124, %v108, 0
    %128 = vmatprep.subr.mxu0 0.0
    %129 = vmatpush1.msra.mxu0 %v109
    %130 = vmatprep.subr.mxu0 0.0
    %131 = vmatpush1.msra.mxu0 %v110
    %132 = vmatprep.subr.mxu0 0.0
    %133 = vmatpush1.msra.mxu0 %v111
    %134 = vmatprep.subr.mxu0 0.0
    %135 = vmatpush1.msra.mxu0 %v112
    %136 = vmatprep.subr.mxu0 0.0
    %137 = vmatpush1.msra.mxu0 %v113
    %138 = vmatprep.subr.mxu0 0.0
    %139 = vmatpush1.msra.mxu0 %v114
    %140 = vmatprep.subr.mxu0 0.0
    %141 = vmatpush1.msra.mxu0 %v115
    %142 = vmatprep.subr.mxu0 0.0
    %143 = vmatpush1.msra.mxu0 %v116
    %144 = vmatprep.subr.mxu0 0.0
    %145 = vmatpush1.msra.mxu0 0.0
    %146 = vmatprep.subr.mxu0 0.0
    %147 = vmatpush1.msra.mxu0 0.0
    %148 = vmatprep.subr.mxu0 0.0
    %149 = vmatpush1.msra.mxu0 0.0
    %150 = vmatprep.subr.mxu0 0.0
    %151 = vmatpush1.msra.mxu0 0.0
    %152 = vmatprep.subr.mxu0 0.0
    %153 = vmatpush1.msra.mxu0 0.0
    %154 = vmatprep.subr.mxu0 0.0
    %155 = vmatpush1.msra.mxu0 0.0
    %156 = vmatprep.subr.mxu0 0.0
    %157 = vmatpush1.msra.mxu0 0.0
    %158 = vmatprep.subr.mxu0 0.0
    %159 = vmatpush1.msra.mxu0 0.0
    %160 = vmatprep.subr.mxu0 0.0
    %161 = vmatpush1.msra.mxu0 0.0
    %162 = vmatprep.subr.mxu0 0.0
    %163 = vmatpush1.msra.mxu0 0.0
    %164 = vmatprep.subr.mxu0 0.0
    %165 = vmatpush1.msra.mxu0 0.0
    %166 = vmatprep.subr.mxu0 0.0
    %167 = vmatpush1.msra.mxu0 0.0
    %168 = vmatprep.subr.mxu0 0.0
    %169 = vmatpush1.msra.mxu0 0.0
    %170 = vmatprep.subr.mxu0 0.0
    %171 = vmatpush1.msra.mxu0 0.0
    %172 = vmatprep.subr.mxu0 0.0
    %173 = vmatpush1.msra.mxu0 0.0
    %174 = vmatprep.subr.mxu0 0.0
    %175 = vmatpush1.msra.mxu0 0.0
    %176 = vmatprep.subr.mxu0 0.0
    %177 = vmatpush1.msra.mxu0 0.0
    %178 = vmatprep.subr.mxu0 0.0
    %179 = vmatpush1.msra.mxu0 0.0
    %180 = vmatprep.subr.mxu0 0.0
    %181 = vmatpush1.msra.mxu0 0.0
    %182 = vmatprep.subr.mxu0 0.0
    %183 = vmatpush1.msra.mxu0 0.0
    %184 = vmatprep.subr.mxu0 0.0
    %185 = vmatpush1.msra.mxu0 0.0
    %186 = vmatprep.subr.mxu0 0.0
    %187 = vmatpush1.msra.mxu0 0.0
    %188 = vmatprep.subr.mxu0 0.0
    %189 = vmatpush1.msra.mxu0 0.0
    %190 = vmatprep.subr.mxu0 0.0
    %191 = vmatpush1.msra.mxu0 0.0
    %192 = vmatprep.mubr.f32.mxu0 0.0
    %193 = vmatmul.mubr.f32.gmra.mrb[0].mxu0 %v126
    %v194 = vpop.f32.mrb[0].mxu0
    %v195 = vadd.f32 %v122, %v194
    %v196 = vpop.f32.mrb[0].mxu0
    %197 = vdwg.mxu0
    %v198 = vmul.f32 %v195, 0.01
    %v199 = vmax.f32 %v195, %v198
    %vm200 = vcmask 130048
    %201 = vst.msk [vmem:[#allocation2] sm:$0xff] %vm200, %v199
    // Predicated region
    $region22: #{tpu_custom_call.1} parent=1 // pred_check
      _
    $region23: #{tpu_custom_call.1} parent=1 // pred_check_branch
      %203 = sbr.rel (0) target = $region25
    $region24: #{tpu_custom_call.1} parent=1 // pred_region
      %s205 = ssub.s32 128, 128
      %206 = vsyncadd [#allocation3], %s205
      %s208 = sshll.u32 [#allocation2], 4
      %s209 = int_to_ptr.vmem [resolvable:$true] %s208
      %211 = dma.vmem_to_hbm [thread:$0]  %s209, 128, %s5, [#allocation3]
    $region25: #{tpu_custom_call.1} parent=1 // pred_fallthru
      _
    // Predicated region
    $region26: #{tpu_custom_call.1} parent=1 // pred_check
      _
    $region27: #{tpu_custom_call.1} parent=1 // pred_check_branch
      %213 = sbr.rel (0) target = $region29
    $region28: #{tpu_custom_call.1} parent=1 // pred_region
      %214 = dma.done [#allocation3], 128
    $region29: #{tpu_custom_call.1} parent=1 // pred_fallthru
      _
    %215 = vsyncpa [#allocation3], 1

</llo_original>
